<compile_context>
chip_gen: v5e
topology: v5e:2x2
jax: 0.10.0
libtpu: 0.0.40
codegen_flags: <defaults>
</compile_context>

<pallas_src>
import numpy as np
import jax
import jax.numpy as jnp
from jax.experimental import pallas as pl
from jax.experimental.pallas import tpu as pltpu

_LANE = 128
_MAX_LANES = 4096


# ---------------------------------------------------------------------------
# Per-generation configuration
# ---------------------------------------------------------------------------
def _chip_config():
    """(block_budget_bytes, vmem_limit_bytes) for the tiled copy path.

    BlockSpec double-buffers both the input and the output, so steady-state
    VMEM footprint ~= 4x block bytes; keep that well under each chip's VMEM.
    """
    mib = 1024 * 1024
    try:
        vmem_cap = pltpu.get_tpu_info().vmem_capacity_bytes
    except Exception:  # hardware info unavailable -> conservative defaults
        vmem_cap = None
    if vmem_cap is not None and vmem_cap <= 64 * mib:
        # v7x-class: 64 MiB VMEM, ~3.2 TB/s HBM.  Bigger blocks amortize the
        # ~0.35 us per-grid-step overhead; 6 MiB blocks -> ~24 MiB footprint.
        return 6 * mib, 40 * mib
    if vmem_cap is not None:
        # v5e / v6e: 128 MiB physical VMEM.  4 MiB blocks (~16 MiB footprint)
        # with an explicit 32 MiB scoped limit (safe on both generations).
        return 4 * mib, 32 * mib
    # Unknown chip: fits every default scoped-VMEM limit (even v5e's 16 MiB).
    return 2 * mib, None


def _sublane_for(dtype):
    """Packed rows per sublane group: 8 (4-byte), 16 (bf16/fp16), 32 (int8)."""
    itemsize = np.dtype(dtype).itemsize
    return max(8, 32 // max(itemsize, 1))


# ---------------------------------------------------------------------------
# Kernels
# ---------------------------------------------------------------------------
def _copy_kernel(x_ref, o_ref):
    # FlattenLayer has no arithmetic; the "compute" is materializing the copy.
    o_ref[...] = x_ref[...]


def _dma_copy_kernel(x_hbm_ref, o_hbm_ref, sem):
    # Pure HBM->HBM copy: one contiguous DMA, no VMEM round trip, no vld/vst.
    copy = pltpu.make_async_copy(x_hbm_ref, o_hbm_ref, sem)
    copy.start()
    copy.wait()


def _dma_flatten(x2):
    """Materialized copy via a direct HBM->HBM DMA (default materialized path)."""
    n, d = x2.shape
    nbytes = n * d * np.dtype(x2.dtype).itemsize
    return pl.pallas_call(
        _dma_copy_kernel,
        out_shape=jax.ShapeDtypeStruct((n, d), x2.dtype),
        in_specs=[pl.BlockSpec(memory_space=pl.ANY)],
        out_specs=pl.BlockSpec(memory_space=pl.ANY),
        scratch_shapes=[pltpu.SemaphoreType.DMA],
        cost_estimate=pl.CostEstimate(
            flops=0, transcendentals=0, bytes_accessed=2 * nbytes),
    )(x2)


# ---------------------------------------------------------------------------
# BlockSpec-pipelined VMEM copy (lane-dense slab route)
# ---------------------------------------------------------------------------
def _pick_slab_shape(total, sublane):
    """Pick (R, C) with R*C == total and C a multiple of 128.

    Prefers R % sublane == 0 (full packed-sublane occupancy), then the largest
    C (lane-dense, bigger contiguous DMA descriptors).  Returns None when no
    lane-aligned factorization exists (total not a multiple of 128)."""
    best_key, best_rc = None, None
    c = _LANE
    while c <= min(_MAX_LANES, total):
        if total % c == 0:
            r = total // c
            key = (r % sublane == 0, c)
            if best_key is None or key > best_key:
                best_key, best_rc = key, (r, c)
        c += _LANE
    return best_rc


def _pick_row_block(r, row_bytes, sublane, block_budget):
    """Rows per block: budget-capped, sublane-multiple, >=2 blocks when tall
    enough (so v7x's two TensorCores both get work), preferring a divisor of r."""
    max_rows = max(block_budget // max(row_bytes, 1), 1)
    max_rows = max((max_rows // sublane) * sublane, sublane)
    if r >= 2 * sublane:
        half = (((r + 1) // 2) // sublane) * sublane
        if half >= sublane:
            max_rows = min(max_rows, half)
    max_rows = min(max_rows, r)
    lo = max(int(max_rows * 0.75), sublane)
    for cand in range(max_rows, lo - 1, -sublane):
        if cand > 0 and r % cand == 0:
            return cand            # exact divisor: no ragged tail block
    return max_rows                # ragged tail handled by the cdiv grid


def _row_tiled_copy(x2, block_budget, vmem_limit):
    """Copy a 2-D array through a BlockSpec-pipelined VMEM kernel.

    Row blocks are multiples of the dtype-aware sublane count and bounded by
    the per-chip block budget (never the whole batch dim in one block).  The
    column block is the full width when a sublane-row group fits the budget
    (every block is a single contiguous HBM range); otherwise a 128-multiple
    tile with the ragged last column block handled by the cdiv grid.
    """
    r, c = x2.shape
    itemsize = np.dtype(x2.dtype).itemsize
    sublane = _sublane_for(x2.dtype)
    nbytes = r * c * itemsize

    if c <= _LANE or sublane * c * itemsize <= block_budget:
        col_blk = c                       # full width (legal full-extent dim)
    else:
        col_blk = max((block_budget // (sublane * itemsize)) // _LANE, 1) * _LANE
        col_blk = min(col_blk, (c // _LANE) * _LANE)

    row_blk = _pick_row_block(r, col_blk * itemsize, sublane, block_budget)
    grid = (pl.cdiv(r, row_blk), pl.cdiv(c, col_blk))

    return pl.pallas_call(
        _copy_kernel,
        out_shape=jax.ShapeDtypeStruct((r, c), x2.dtype),
        grid=grid,
        in_specs=[pl.BlockSpec((row_blk, col_blk), lambda i, j: (i, j))],
        out_specs=pl.BlockSpec((row_blk, col_blk), lambda i, j: (i, j)),
        compiler_params=pltpu.CompilerParams(
            dimension_semantics=("parallel", "parallel"),
            vmem_limit_bytes=vmem_limit),
        cost_estimate=pl.CostEstimate(
            flops=0, transcendentals=0, bytes_accessed=2 * nbytes),
    )(x2)


def _tiled_flatten(x2):
    """Materialized copy through the VMEM pipeline (lane-dense slab route)."""
    n, d = x2.shape
    block_budget, vmem_limit = _chip_config()
    sublane = _sublane_for(x2.dtype)

    slab = _pick_slab_shape(n * d, sublane)
    if slab is not None:
        # Preferred path: flat, fully contiguous, lane-dense (rows x C) slab.
        r, c = slab
        out = _row_tiled_copy(jnp.reshape(x2, (r, c)), block_budget, vmem_limit)
        return jnp.reshape(out, (n, d))   # free view

    # Total not a multiple of 128: tile the (n, d) layout directly with
    # bounded row blocks (fixes the old unbounded (n, ...) fallback blocks).
    return _row_tiled_copy(x2, block_budget, vmem_limit)


# ---------------------------------------------------------------------------
# Public wrapper: FlattenLayer.forward
# ---------------------------------------------------------------------------
def flatten_layer(x, *, materialize=False, use_dma=True):
    """Pallas/JAX equivalent of FlattenLayer.forward: x.view(x.shape[0], -1).

    Default (materialize=False): zero-cost row-major reshape — identical
    semantics to torch .view on a contiguous tensor, no kernel launched.
    materialize=True forces a fresh buffer:
      * use_dma=True  -> direct HBM->HBM DMA copy (optimal on v5e/v6e/v7x),
      * use_dma=False -> BlockSpec-pipelined VMEM copy (tiled slab route).
    """
    n = x.shape[0]
    d = int(np.prod(x.shape[1:]))
    x2 = jnp.reshape(x, (n, d))
    if not materialize:
        return x2
    if use_dma:
        return _dma_flatten(x2)
    return _tiled_flatten(x2)


if __name__ == "__main__":
    key = jax.random.PRNGKey(0)
    k1, k2 = jax.random.split(key)

    # Small NCHW input consistent with a conv feature map: (N=2, C=4, H=16, W=16)
    x = jax.random.normal(k1, (2, 4, 16, 16), dtype=jnp.float32)
    ref = np.asarray(x).reshape(x.shape[0], -1)

    # 1) Default zero-copy production path.
    view = jax.block_until_ready(flatten_layer(x))
    assert view.shape == ref.shape and view.dtype == x.dtype
    np.testing.assert_array_equal(np.asarray(view), ref)

    # 2) Materialized copy via the direct HBM->HBM DMA kernel.
    out_dma = jax.block_until_ready(flatten_layer(x, materialize=True))
    assert out_dma.shape == ref.shape and out_dma.dtype == x.dtype
    np.testing.assert_array_equal(np.asarray(out_dma), ref)

    # 3) Materialized copy via the VMEM-pipelined slab route.
    out_tiled = jax.block_until_ready(
        flatten_layer(x, materialize=True, use_dma=False))
    assert out_tiled.shape == ref.shape and out_tiled.dtype == x.dtype
    np.testing.assert_array_equal(np.asarray(out_tiled), ref)

    # 4) Exercise the bounded row-tiled fallback (element count not % 128).
    x_odd = jax.random.normal(k2, (2, 3, 5, 7), dtype=jnp.float32)
    ref_odd = np.asarray(x_odd).reshape(x_odd.shape[0], -1)
    out_odd = jax.block_until_ready(
        flatten_layer(x_odd, materialize=True, use_dma=False))
    assert out_odd.shape == ref_odd.shape and out_odd.dtype == x_odd.dtype
    np.testing.assert_array_equal(np.asarray(out_odd), ref_odd)

    print("KERNEL_OK")
</pallas_src>

<mosaic_0001>
module attributes {stable_mosaic.version = 11 : i64} {
  func.func @_dma_copy_kernel(%arg0: memref<2x1024xf32, #tpu.memory_space<any>>, %arg1: memref<2x1024xf32, #tpu.memory_space<any>>, %arg2: memref<!tpu.dma_semaphore, #tpu.memory_space<semaphore_mem>>) attributes {dimension_semantics = [], scalar_prefetch = 0 : i64, scratch_operands = 1 : i64, tpu.core_type = #tpu.core_type<tc>} {
    tpu.enqueue_dma source(%arg0 : memref<2x1024xf32, #tpu.memory_space<any>>) target(%arg1 : memref<2x1024xf32, #tpu.memory_space<any>>) target_semaphore(%arg2 : memref<!tpu.dma_semaphore, #tpu.memory_space<semaphore_mem>>)
    tpu.wait_dma2 semaphore(%arg2 : memref<!tpu.dma_semaphore, #tpu.memory_space<semaphore_mem>>) src(%arg0 : memref<2x1024xf32, #tpu.memory_space<any>>) dst(%arg1 : memref<2x1024xf32, #tpu.memory_space<any>>)
    return
  }
}

</mosaic_0001>

<llo_original>
// kernel: tpu_custom_call.1
$region0: #{tpu_custom_call.1}
  #allocation0 [shape = 'u32[]', space=smem, size = 0x4, offset = 0x4, fixed_abs, tag = 'smem constant byte address 0x4 - core index']
  #allocation1 [shape = 'u32[72,128]{1,0:T(1,128)}', space=vmem, size = 0x9000, scoped, tag = 'internal scratch']
  #allocation2 [shape = 's32[1]{0}', space=sflag, size = 0x4, scoped, tag = 'scratch operand']
  #allocation3 [shape = 's32[]', space=sflag, size = 0x4, offset = 0, fixed_abs, tag = 'sflag constant byte address 0x0 - dummy sync flag']
  #allocation4 [shape = 'u32[0]{0}', space=smem, size = 0, offset = 0, fixed_abs, tag = 'smem constant byte address 0x0 - null']
  %s0 = inlined_call_operand.hbm [shape: f32[2,1024], index: 0, kind: input, shape index: {}]
  %s1 = inlined_call_operand.hbm [shape: f32[2,1024], index: 1, kind: output, shape index: {}]
  %s2 = sld [smem:[#allocation0]]
  $region2: #{tpu_custom_call.1} parent=0
    _
  %s4 = ssub.s32 1, %s2
  %s5 = scalar_select 0, %s4, %s2
  %s7 = sshll.u32 1, 14
  %s8 = sxor.u32 4294967295, %s7
  %s10 = sshll.u32 %s0, 4
  %s11 = int_to_ptr.hbm [resolvable:$true] %s10
  %s12 = sshll.u32 %s1, 4
  %s13 = int_to_ptr.hbm [resolvable:$true] %s12
  %16 = dma.general %s11, 256, %s13, [#allocation2], [#allocation3], [#allocation4], 0, 0
  %s17 = smul.u32 2, 1
  %s18 = smul.u32 %s17, 8
  %s19 = sshll.u32 %s18, 4
  %20 = dma.done [#allocation2], %s19
  %21 = vsyncmov [#allocation2]
  %s22 = vpop.sfrf %21
  %p23 = scmp.eq.s32.totalorder %s22, 0
  %p24 = pneg %p23
  %26 = shalt.err (%p24)

</llo_original>
